<compile_context>
chip_gen: v5e
topology: v5e:2x2
jax: 0.10.0
libtpu: 0.0.40
codegen_flags: <defaults>
</compile_context>

<pallas_src>
import jax
import jax.numpy as jnp
from jax import lax
from jax.experimental import pallas as pl
from jax.experimental.pallas import tpu as pltpu


def mlp_kernel(x_ref, w1_ref, b1_ref, w2_ref, b2_ref, w3_ref, b3_ref, o_ref):
    # Layer 1: contract the feature axis of W1 (H, F) with the batch-major x
    # tile (tb, F) -> (H, tb).  Batch lands on lanes; f32 accumulation.
    h = lax.dot_general(
        w1_ref[...], x_ref[...],
        dimension_numbers=(((1,), (1,)), ((), ())),
        preferred_element_type=jnp.float32)
    h = jnp.maximum(h + b1_ref[...], 0.0)

    # Layer 2: (H, H) @ (H, tb) -> (H, tb).  Cast the activation to the weight
    # dtype (bf16 fast path; no-op in exact-f32 mode), accumulate in f32.
    h = jnp.dot(w2_ref[...], h.astype(w2_ref.dtype),
                preferred_element_type=jnp.float32)
    h = jnp.maximum(h + b2_ref[...], 0.0)

    # Head (H -> 1): VPU multiply + sublane (XLU) reduce -> lane-dense (1, tb)
    # row; b3 is a scalar read from SMEM.
    o = jnp.sum(h * w3_ref[...], axis=0, keepdims=True) + b3_ref[0, 0]
    o_ref[...] = jnp.tanh(o).astype(o_ref.dtype)


def _round_up(x, m):
    return ((x + m - 1) // m) * m


def _pick_tb(batch, tb):
    """Batch tile: multiple of 128 (lane-dense output), no bigger than the
    padded batch, and -- when there is more than one tile -- an even tile
    count so the 'parallel' grid axis splits evenly across 2-TensorCore parts
    (v7x).  Never shrinks tb just because the chip has a single core."""
    tb = max(128, (tb // 128) * 128)
    tb = min(tb, _round_up(batch, 128))        # don't over-pad tiny batches
    num_tiles = -(-batch // tb)
    if num_tiles > 1 and num_tiles % 2 == 1:
        num_tiles += 1
        tb = max(128, _round_up(-(-batch // num_tiles), 128))
    return tb


def trading_model_forward(x, params, *, tb=2048, use_bf16=True):
    """Fused MLP forward. x: [B, input_size] f32 -> [B, 1] f32.

    use_bf16=True casts x / W1 / W2 to bfloat16 (f32 accumulation on the MXU);
    use_bf16=False reproduces the f32 PyTorch reference to ~1e-5.
    """
    w1, b1, w2, b2, w3, b3 = params
    B, F = x.shape
    H = w1.shape[0]

    tb = _pick_tb(B, tb)
    num_tiles = -(-B // tb)
    B_pad = num_tiles * tb
    if B_pad != B:
        x = jnp.pad(x, ((0, B_pad - B), (0, 0)))

    if use_bf16:
        x_in = x.astype(jnp.bfloat16)
        w1_in = w1.astype(jnp.bfloat16)
        w2_in = w2.astype(jnp.bfloat16)
    else:
        x_in, w1_in, w2_in = x, w1, w2

    out = pl.pallas_call(
        mlp_kernel,
        out_shape=jax.ShapeDtypeStruct((num_tiles, tb), jnp.float32),
        grid_spec=pltpu.PrefetchScalarGridSpec(
            num_scalar_prefetch=0,
            grid=(num_tiles,),
            in_specs=[
                pl.BlockSpec((tb, F), lambda i: (i, 0)),   # x tile, batch-major
                pl.BlockSpec((H, F), lambda i: (0, 0)),    # W1 (VMEM-resident)
                pl.BlockSpec((H, 1), lambda i: (0, 0)),    # b1 column
                pl.BlockSpec((H, H), lambda i: (0, 0)),    # W2 (VMEM-resident)
                pl.BlockSpec((H, 1), lambda i: (0, 0)),    # b2 column
                pl.BlockSpec((H, 1), lambda i: (0, 0)),    # W3 column
                pl.BlockSpec(memory_space=pltpu.MemorySpace.SMEM),  # b3 scalar
            ],
            out_specs=pl.BlockSpec((1, tb), lambda i: (i, 0)),
        ),
        compiler_params=pltpu.CompilerParams(
            dimension_semantics=("parallel",),
            vmem_limit_bytes=32 * 1024 * 1024,
        ),
    )(x_in, w1_in, b1, w2_in, b2, w3, b3)

    return out.reshape(B_pad, 1)[:B]


def init_params(key, input_size, hidden_size=64):
    """Deterministic init mimicking nn.Linear: U(-1/sqrt(fan_in), 1/sqrt(fan_in)).
    Weights are (out_features, in_features); biases are (out, 1) columns; the
    head weight is stored as an (H, 1) column."""
    def linear(key, fan_in, fan_out):
        kw, kb = jax.random.split(key)
        bound = 1.0 / jnp.sqrt(jnp.float32(fan_in))
        w = jax.random.uniform(kw, (fan_out, fan_in), jnp.float32, -bound, bound)
        b = jax.random.uniform(kb, (fan_out, 1), jnp.float32, -bound, bound)
        return w, b

    k1, k2, k3 = jax.random.split(key, 3)
    w1, b1 = linear(k1, input_size, hidden_size)
    w2, b2 = linear(k2, hidden_size, hidden_size)
    w3t, b3 = linear(k3, hidden_size, 1)        # w3t: (1, H)
    return (w1, b1, w2, b2, w3t.T, b3)          # head weight stored as (H, 1)


if __name__ == "__main__":
    key = jax.random.PRNGKey(0)
    k_x, k_p = jax.random.split(key)

    batch = 8
    input_size = 16
    hidden_size = 64

    x = jax.random.normal(k_x, (batch, input_size), jnp.float32)
    params = init_params(k_p, input_size, hidden_size)

    # Pure-JAX reference (PyTorch semantics: y = x @ W.T + b per layer)
    w1, b1, w2, b2, w3, b3 = params
    h = jnp.maximum(x @ w1.T + b1[:, 0], 0.0)
    h = jnp.maximum(h @ w2.T + b2[:, 0], 0.0)
    ref = jnp.tanh(h @ w3 + b3)

    # Exact f32 mode: matches the PyTorch reference tightly.
    out_f32 = jax.block_until_ready(trading_model_forward(x, params, use_bf16=False))
    assert out_f32.shape == (batch, 1)
    assert jnp.allclose(out_f32, ref, atol=1e-5), "f32 mismatch vs reference"

    # Fast bf16 mode (default): f32 accumulation, looser tolerance.
    out_bf16 = jax.block_until_ready(trading_model_forward(x, params))
    assert out_bf16.shape == (batch, 1)
    assert jnp.allclose(out_bf16, ref, atol=2e-2), "bf16 mismatch vs reference"

    print("KERNEL_OK")
</pallas_src>

<mosaic_0001>
module attributes {stable_mosaic.version = 11 : i64} {
  func.func @mlp_kernel(%arg0: i32, %arg1: memref<128x16xf32, #tpu.memory_space<vmem>>, %arg2: memref<64x16xf32, #tpu.memory_space<vmem>>, %arg3: memref<64x1xf32, #tpu.memory_space<vmem>>, %arg4: memref<64x64xf32, #tpu.memory_space<vmem>>, %arg5: memref<64x1xf32, #tpu.memory_space<vmem>>, %arg6: memref<64x1xf32, #tpu.memory_space<vmem>>, %arg7: memref<1x1xf32, #tpu.memory_space<smem>>, %arg8: memref<1x128xf32, #tpu.memory_space<vmem>>) attributes {dimension_semantics = [#tpu.dimension_semantics<parallel>], iteration_bounds = array<i64: 1>, scalar_prefetch = 0 : i64, scratch_operands = 0 : i64, tpu.core_type = #tpu.core_type<tc>, window_params = [{transform_indices = @transform_0, window_bounds = array<i64: 128, 16>}, {pipeline_mode = #tpu.pipeline_mode<synchronous>, transform_indices = @transform_1, window_bounds = array<i64: 64, 16>}, {pipeline_mode = #tpu.pipeline_mode<synchronous>, transform_indices = @transform_2, window_bounds = array<i64: 64, 1>}, {pipeline_mode = #tpu.pipeline_mode<synchronous>, transform_indices = @transform_3, window_bounds = array<i64: 64, 64>}, {pipeline_mode = #tpu.pipeline_mode<synchronous>, transform_indices = @transform_4, window_bounds = array<i64: 64, 1>}, {pipeline_mode = #tpu.pipeline_mode<synchronous>, transform_indices = @transform_5, window_bounds = array<i64: 64, 1>}, {transform_indices = @transform_6, window_bounds = array<i64: 1, 1>}, {transform_indices = @transform_7, window_bounds = array<i64: 1, 128>}]} {
    %c0 = arith.constant 0 : index
    %c0_0 = arith.constant 0 : index
    %0 = vector.load %arg2[%c0, %c0_0] : memref<64x16xf32, #tpu.memory_space<vmem>>, vector<64x16xf32>
    %c0_1 = arith.constant 0 : index
    %c0_2 = arith.constant 0 : index
    %1 = vector.load %arg1[%c0_1, %c0_2] : memref<128x16xf32, #tpu.memory_space<vmem>>, vector<128x16xf32>
    %cst = arith.constant dense<0.000000e+00> : vector<64x128xf32>
    %2 = tpu.matmul %0, %1, %cst {dimension_numbers = #tpu.dot_dimension_numbers<[1], [1], [0], [0], [0, 0, 1, 0], [], []>} : vector<64x16xf32>, vector<128x16xf32>, vector<64x128xf32> -> vector<64x128xf32>
    %c0_3 = arith.constant 0 : index
    %c0_4 = arith.constant 0 : index
    %3 = vector.load %arg3[%c0_3, %c0_4] : memref<64x1xf32, #tpu.memory_space<vmem>>, vector<64x1xf32>
    %4 = vector.broadcast %3 : vector<64x1xf32> to vector<64x128xf32>
    %5 = arith.addf %2, %4 : vector<64x128xf32>
    %cst_5 = arith.constant 0.000000e+00 : f32
    %6 = vector.broadcast %cst_5 : f32 to vector<64x128xf32>
    %7 = arith.maximumf %5, %6 : vector<64x128xf32>
    %c0_6 = arith.constant 0 : index
    %c0_7 = arith.constant 0 : index
    %8 = vector.load %arg4[%c0_6, %c0_7] : memref<64x64xf32, #tpu.memory_space<vmem>>, vector<64x64xf32>
    %cst_8 = arith.constant dense<0.000000e+00> : vector<64x128xf32>
    %9 = tpu.matmul %8, %7, %cst_8 {dimension_numbers = #tpu.dot_dimension_numbers<[1], [0], [0], [1], [0, 0, 1, 1], [], []>} : vector<64x64xf32>, vector<64x128xf32>, vector<64x128xf32> -> vector<64x128xf32>
    %c0_9 = arith.constant 0 : index
    %c0_10 = arith.constant 0 : index
    %10 = vector.load %arg5[%c0_9, %c0_10] : memref<64x1xf32, #tpu.memory_space<vmem>>, vector<64x1xf32>
    %11 = vector.broadcast %10 : vector<64x1xf32> to vector<64x128xf32>
    %12 = arith.addf %9, %11 : vector<64x128xf32>
    %cst_11 = arith.constant 0.000000e+00 : f32
    %13 = vector.broadcast %cst_11 : f32 to vector<64x128xf32>
    %14 = arith.maximumf %12, %13 : vector<64x128xf32>
    %c0_12 = arith.constant 0 : index
    %c0_13 = arith.constant 0 : index
    %15 = vector.load %arg6[%c0_12, %c0_13] : memref<64x1xf32, #tpu.memory_space<vmem>>, vector<64x1xf32>
    %16 = vector.broadcast %15 : vector<64x1xf32> to vector<64x128xf32>
    %17 = arith.mulf %14, %16 : vector<64x128xf32>
    %cst_14 = arith.constant dense<0.000000e+00> : vector<128xf32>
    %18 = vector.multi_reduction <add>, %17, %cst_14 [0] : vector<64x128xf32> to vector<128xf32>
    %19 = vector.shape_cast %18 : vector<128xf32> to vector<1x128xf32>
    %c0_15 = arith.constant 0 : index
    %c0_16 = arith.constant 0 : index
    %20 = memref.load %arg7[%c0_15, %c0_16] : memref<1x1xf32, #tpu.memory_space<smem>>
    %21 = vector.broadcast %20 : f32 to vector<1x128xf32>
    %22 = arith.addf %19, %21 : vector<1x128xf32>
    %23 = math.tanh %22 : vector<1x128xf32>
    %c0_17 = arith.constant 0 : index
    %c0_18 = arith.constant 0 : index
    %24 = vector.load %arg8[%c0_17, %c0_18] : memref<1x128xf32, #tpu.memory_space<vmem>>, vector<1x128xf32>
    tpu.vector_store %arg8[%c0_17, %c0_18], %23 {strides = array<i32>} : memref<1x128xf32, #tpu.memory_space<vmem>>, vector<1x128xf32>,
    return
  }
  func.func @transform_0(%arg0: i32) -> (i32, i32) {
    %c0_i32 = arith.constant 0 : i32
    %c0_i32_0 = arith.constant 0 : i32
    return %arg0, %c0_i32 : i32, i32
  }
  func.func @transform_1(%arg0: i32) -> (i32, i32) {
    %c0_i32 = arith.constant 0 : i32
    %c0_i32_0 = arith.constant 0 : i32
    %c0_i32_1 = arith.constant 0 : i32
    return %c0_i32, %c0_i32_0 : i32, i32
  }
  func.func @transform_2(%arg0: i32) -> (i32, i32) {
    %c0_i32 = arith.constant 0 : i32
    %c0_i32_0 = arith.constant 0 : i32
    %c0_i32_1 = arith.constant 0 : i32
    return %c0_i32, %c0_i32_0 : i32, i32
  }
  func.func @transform_3(%arg0: i32) -> (i32, i32) {
    %c0_i32 = arith.constant 0 : i32
    %c0_i32_0 = arith.constant 0 : i32
    %c0_i32_1 = arith.constant 0 : i32
    return %c0_i32, %c0_i32_0 : i32, i32
  }
  func.func @transform_4(%arg0: i32) -> (i32, i32) {
    %c0_i32 = arith.constant 0 : i32
    %c0_i32_0 = arith.constant 0 : i32
    %c0_i32_1 = arith.constant 0 : i32
    return %c0_i32, %c0_i32_0 : i32, i32
  }
  func.func @transform_5(%arg0: i32) -> (i32, i32) {
    %c0_i32 = arith.constant 0 : i32
    %c0_i32_0 = arith.constant 0 : i32
    %c0_i32_1 = arith.constant 0 : i32
    return %c0_i32, %c0_i32_0 : i32, i32
  }
  func.func @transform_6(%arg0: i32) -> (i32, i32) {
    %c0_i32 = arith.constant 0 : i32
    %c0_i32_0 = arith.constant 0 : i32
    %c0_i32_1 = arith.constant 0 : i32
    return %c0_i32, %c0_i32_0 : i32, i32
  }
  func.func @transform_7(%arg0: i32) -> (i32, i32) {
    %c0_i32 = arith.constant 0 : i32
    %c0_i32_0 = arith.constant 0 : i32
    return %arg0, %c0_i32 : i32, i32
  }
}

</mosaic_0001>

<llo_original>
// kernel: tpu_custom_call.1
$region0: #{tpu_custom_call.1}
  #allocation0 [shape = 'u32[]', space=smem, size = 0x4, offset = 0x4, fixed_abs, tag = 'smem constant byte address 0x4 - core index']
  #allocation1 [shape = 'u32[72,128]{1,0:T(1,128)}', space=vmem, size = 0x9000, scoped, tag = 'internal scratch']
  #allocation2 [shape = 'f32[1,1]{1,0:T(1,128)S(6)}', space=smem, size = 0x200, scoped, tag = 'scoped memory for tpu_custom_call.1']
  %s0 = inlined_call_operand.vmem [shape: f32[128,16], index: 0, kind: input, shape index: {}]
  %s1 = inlined_call_operand.vmem [shape: f32[64,16], index: 1, kind: input, shape index: {}]
  %s2 = inlined_call_operand.vmem [shape: f32[64,1], index: 2, kind: input, shape index: {}]
  %s3 = inlined_call_operand.vmem [shape: f32[64,64], index: 3, kind: input, shape index: {}]
  %s4 = inlined_call_operand.vmem [shape: f32[64,1], index: 4, kind: input, shape index: {}]
  %s5 = inlined_call_operand.vmem [shape: f32[64,1], index: 5, kind: input, shape index: {}]
  %s6 = inlined_call_operand.<no memory space> [shape: f32[1,1], index: 6, kind: input, shape index: {}]
  %s7 = inlined_call_operand.hbm [shape: f32[1,128], index: 7, kind: output, shape index: {}]
  %s8 = sld [smem:[#allocation0]]
  $region38: #{tpu_custom_call.1} parent=0
    _
  %s10 = ssub.s32 1, %s8
  %s11 = scalar_select 0, %s10, %s8
  %12 = sst [smem:[#allocation2]] %s6
  $region1: #{tpu_custom_call.1} parent=0
    #allocation3 [shape = 'u8[512]{0}', space=vmem, size = 0x400, scoped, tag = 'output window, operand 0, single buffered']
    #allocation4 [shape = 's32[1]{0}', space=sflag, size = 0x4, scoped, tag = 'scoped memory for tpu_custom_call.1']
    %13 = vsyncpa [#allocation4], 0
    // Predicated region
    $region2: #{tpu_custom_call.1} parent=1 // pred_check
      _
    $region3: #{tpu_custom_call.1} parent=1 // pred_check_branch
      %15 = sbr.rel (0) target = $region5
    $region4: #{tpu_custom_call.1} parent=1 // pred_region
      _
    $region5: #{tpu_custom_call.1} parent=1 // pred_fallthru
      _
    // Predicated region
    $region6: #{tpu_custom_call.1} parent=1 // pred_check
      _
    $region7: #{tpu_custom_call.1} parent=1 // pred_check_branch
      %17 = sbr.rel (0) target = $region9
    $region8: #{tpu_custom_call.1} parent=1 // pred_region
      _
    $region9: #{tpu_custom_call.1} parent=1 // pred_fallthru
      _
    // Predicated region
    $region10: #{tpu_custom_call.1} parent=1 // pred_check
      _
    $region11: #{tpu_custom_call.1} parent=1 // pred_check_branch
      %19 = sbr.rel (0) target = $region13
    $region12: #{tpu_custom_call.1} parent=1 // pred_region
      _
    $region13: #{tpu_custom_call.1} parent=1 // pred_fallthru
      _
    // Predicated region
    $region14: #{tpu_custom_call.1} parent=1 // pred_check
      _
    $region15: #{tpu_custom_call.1} parent=1 // pred_check_branch
      %21 = sbr.rel (0) target = $region17
    $region16: #{tpu_custom_call.1} parent=1 // pred_region
      _
    $region17: #{tpu_custom_call.1} parent=1 // pred_fallthru
      _
    // Predicated region
    $region18: #{tpu_custom_call.1} parent=1 // pred_check
      _
    $region19: #{tpu_custom_call.1} parent=1 // pred_check_branch
      %23 = sbr.rel (0) target = $region21
    $region20: #{tpu_custom_call.1} parent=1 // pred_region
      _
    $region21: #{tpu_custom_call.1} parent=1 // pred_fallthru
      _
    // Predicated region
    $region22: #{tpu_custom_call.1} parent=1 // pred_check
      _
    $region23: #{tpu_custom_call.1} parent=1 // pred_check_branch
      %25 = sbr.rel (0) target = $region25
    $region24: #{tpu_custom_call.1} parent=1 // pred_region
      _
    $region25: #{tpu_custom_call.1} parent=1 // pred_fallthru
      _
    // Predicated region
    $region26: #{tpu_custom_call.1} parent=1 // pred_check
      _
    $region27: #{tpu_custom_call.1} parent=1 // pred_check_branch
      %27 = sbr.rel (0) target = $region29
    $region28: #{tpu_custom_call.1} parent=1 // pred_region
      _
    $region29: #{tpu_custom_call.1} parent=1 // pred_fallthru
      _
    %v28 = vld [vmem:[%s1] sm:$0xff]
    %v29 = vld [vmem:[%s1 + $0x8] sm:$0xff]
    %v30 = vld [vmem:[%s1 + $0x10] sm:$0xff]
    %v31 = vld [vmem:[%s1 + $0x18] sm:$0xff]
    %v32 = vld [vmem:[%s1 + $0x20] sm:$0xff]
    %v33 = vld [vmem:[%s1 + $0x28] sm:$0xff]
    %v34 = vld [vmem:[%s1 + $0x30] sm:$0xff]
    %v35 = vld [vmem:[%s1 + $0x38] sm:$0xff]
    %v36 = vld [vmem:[%s0] sm:$0xff]
    %v37 = vld [vmem:[%s0 + $0x8] sm:$0xff]
    %v38 = vld [vmem:[%s0 + $0x10] sm:$0xff]
    %v39 = vld [vmem:[%s0 + $0x18] sm:$0xff]
    %v40 = vld [vmem:[%s0 + $0x20] sm:$0xff]
    %v41 = vld [vmem:[%s0 + $0x28] sm:$0xff]
    %v42 = vld [vmem:[%s0 + $0x30] sm:$0xff]
    %v43 = vld [vmem:[%s0 + $0x38] sm:$0xff]
    %v44 = vld [vmem:[%s0 + $0x40] sm:$0xff]
    %v45 = vld [vmem:[%s0 + $0x48] sm:$0xff]
    %v46 = vld [vmem:[%s0 + $0x50] sm:$0xff]
    %v47 = vld [vmem:[%s0 + $0x58] sm:$0xff]
    %v48 = vld [vmem:[%s0 + $0x60] sm:$0xff]
    %v49 = vld [vmem:[%s0 + $0x68] sm:$0xff]
    %v50 = vld [vmem:[%s0 + $0x70] sm:$0xff]
    %v51 = vld [vmem:[%s0 + $0x78] sm:$0xff]
    %v52 = vld [vmem:[%s2] sm:$0xff]
    %v53 = vld [vmem:[%s2 + $0x8] sm:$0xff]
    %v54 = vld [vmem:[%s2 + $0x10] sm:$0xff]
    %v55 = vld [vmem:[%s2 + $0x18] sm:$0xff]
    %v56 = vld [vmem:[%s2 + $0x20] sm:$0xff]
    %v57 = vld [vmem:[%s2 + $0x28] sm:$0xff]
    %v58 = vld [vmem:[%s2 + $0x30] sm:$0xff]
    %v59 = vld [vmem:[%s2 + $0x38] sm:$0xff]
    %61 = vset.pattern.permute.xlu0 0
    %62 = vperm.xlu0 %61, %v52
    %v63 = vpop.permute.xlu0 %62
    %66 = vset.pattern.permute.xlu0 0
    %67 = vperm.xlu0 %66, %v53
    %v68 = vpop.permute.xlu0 %67
    %71 = vset.pattern.permute.xlu0 0
    %72 = vperm.xlu0 %71, %v54
    %v73 = vpop.permute.xlu0 %72
    %76 = vset.pattern.permute.xlu0 0
    %77 = vperm.xlu0 %76, %v55
    %v78 = vpop.permute.xlu0 %77
    %81 = vset.pattern.permute.xlu0 0
    %82 = vperm.xlu0 %81, %v56
    %v83 = vpop.permute.xlu0 %82
    %86 = vset.pattern.permute.xlu0 0
    %87 = vperm.xlu0 %86, %v57
    %v88 = vpop.permute.xlu0 %87
    %91 = vset.pattern.permute.xlu0 0
    %92 = vperm.xlu0 %91, %v58
    %v93 = vpop.permute.xlu0 %92
    %96 = vset.pattern.permute.xlu0 0
    %97 = vperm.xlu0 %96, %v59
    %v98 = vpop.permute.xlu0 %97
    %vm100 = vcmask 130048
    %v102 = vsel %vm100, %v28, 0
    %v105 = vsel %vm100, %v29, 0
    %v108 = vsel %vm100, %v30, 0
    %v111 = vsel %vm100, %v31, 0
    %v114 = vsel %vm100, %v32, 0
    %v117 = vsel %vm100, %v33, 0
    %v120 = vsel %vm100, %v34, 0
    %v123 = vsel %vm100, %v35, 0
    %v126 = vsel %vm100, %v36, 0
    %v129 = vsel %vm100, %v37, 0
    %v132 = vsel %vm100, %v38, 0
    %v135 = vsel %vm100, %v39, 0
    %v138 = vsel %vm100, %v40, 0
    %v141 = vsel %vm100, %v41, 0
    %v144 = vsel %vm100, %v42, 0
    %v147 = vsel %vm100, %v43, 0
    %v150 = vsel %vm100, %v44, 0
    %v153 = vsel %vm100, %v45, 0
    %v156 = vsel %vm100, %v46, 0
    %v159 = vsel %vm100, %v47, 0
    %v162 = vsel %vm100, %v48, 0
    %v165 = vsel %vm100, %v49, 0
    %v168 = vsel %vm100, %v50, 0
    %v171 = vsel %vm100, %v51, 0
    %173 = vmatpush.xpose.msra.mxu0 %v171
    %174 = vmatpush.xpose.msra.mxu0 %v168
    %175 = vmatpush.xpose.msra.mxu0 %v165
    %176 = vmatpush.xpose.msra.mxu0 %v162
    %177 = vmatpush.xpose.msra.mxu0 %v159
    %178 = vmatpush.xpose.msra.mxu0 %v156
    %179 = vmatpush.xpose.msra.mxu0 %v153
    %180 = vmatpush.xpose.msra.mxu0 %v150
    %181 = vmatpush.xpose.msra.mxu0 %v147
    %182 = vmatpush.xpose.msra.mxu0 %v144
    %183 = vmatpush.xpose.msra.mxu0 %v141
    %184 = vmatpush.xpose.msra.mxu0 %v138
    %185 = vmatpush.xpose.msra.mxu0 %v135
    %186 = vmatpush.xpose.msra.mxu0 %v132
    %187 = vmatpush.xpose.msra.mxu0 %v129
    %188 = vmatpush.xpose.msra.mxu0 %v126
    %189 = vmatmul.f32.gmra.mxu0 %v102
    %v190 = vpop.f32.mrf.mxu0
    %v191 = vadd.f32 %v63, %v190
    %192 = vmatmul.f32.gmra.mxu0 %v105
    %v193 = vpop.f32.mrf.mxu0
    %v194 = vadd.f32 %v68, %v193
    %195 = vmatmul.f32.gmra.mxu0 %v108
    %v196 = vpop.f32.mrf.mxu0
    %v197 = vadd.f32 %v73, %v196
    %198 = vmatmul.f32.gmra.mxu0 %v111
    %v199 = vpop.f32.mrf.mxu0
    %v200 = vadd.f32 %v78, %v199
    %201 = vmatmul.f32.gmra.mxu0 %v114
    %v202 = vpop.f32.mrf.mxu0
    %v203 = vadd.f32 %v83, %v202
    %204 = vmatmul.f32.gmra.mxu0 %v117
    %v205 = vpop.f32.mrf.mxu0
    %v206 = vadd.f32 %v88, %v205
    %207 = vmatmul.f32.gmra.mxu0 %v120
    %v208 = vpop.f32.mrf.mxu0
    %v209 = vadd.f32 %v93, %v208
    %210 = vmatmul.f32.gmra.mxu0 %v123
    %v211 = vpop.f32.mrf.mxu0
    %v212 = vadd.f32 %v98, %v211
    %213 = vdwg.mxu0
    %v214 = vmax.f32 %v191, 0.0
    %v215 = vmax.f32 %v194, 0.0
    %v216 = vmax.f32 %v197, 0.0
    %v217 = vmax.f32 %v200, 0.0
    %v218 = vmax.f32 %v203, 0.0
    %v219 = vmax.f32 %v206, 0.0
    %v220 = vmax.f32 %v209, 0.0
    %v221 = vmax.f32 %v212, 0.0
    %v222 = vld [vmem:[%s3] sm:$0xff]
    %v223 = vld [vmem:[%s3 + $0x8] sm:$0xff]
    %v224 = vld [vmem:[%s3 + $0x10] sm:$0xff]
    %v225 = vld [vmem:[%s3 + $0x18] sm:$0xff]
    %v226 = vld [vmem:[%s3 + $0x20] sm:$0xff]
    %v227 = vld [vmem:[%s3 + $0x28] sm:$0xff]
    %v228 = vld [vmem:[%s3 + $0x30] sm:$0xff]
    %v229 = vld [vmem:[%s3 + $0x38] sm:$0xff]
    %v230 = vld [vmem:[%s4] sm:$0xff]
    %v231 = vld [vmem:[%s4 + $0x8] sm:$0xff]
    %v232 = vld [vmem:[%s4 + $0x10] sm:$0xff]
    %v233 = vld [vmem:[%s4 + $0x18] sm:$0xff]
    %v234 = vld [vmem:[%s4 + $0x20] sm:$0xff]
    %v235 = vld [vmem:[%s4 + $0x28] sm:$0xff]
    %v236 = vld [vmem:[%s4 + $0x30] sm:$0xff]
    %v237 = vld [vmem:[%s4 + $0x38] sm:$0xff]
    %239 = vset.pattern.permute.xlu0 0
    %240 = vperm.xlu0 %239, %v230
    %v241 = vpop.permute.xlu0 %240
    %244 = vset.pattern.permute.xlu0 0
    %245 = vperm.xlu0 %244, %v231
    %v246 = vpop.permute.xlu0 %245
    %249 = vset.pattern.permute.xlu0 0
    %250 = vperm.xlu0 %249, %v232
    %v251 = vpop.permute.xlu0 %250
    %254 = vset.pattern.permute.xlu0 0
    %255 = vperm.xlu0 %254, %v233
    %v256 = vpop.permute.xlu0 %255
    %259 = vset.pattern.permute.xlu0 0
    %260 = vperm.xlu0 %259, %v234
    %v261 = vpop.permute.xlu0 %260
    %264 = vset.pattern.permute.xlu0 0
    %265 = vperm.xlu0 %264, %v235
    %v266 = vpop.permute.xlu0 %265
    %269 = vset.pattern.permute.xlu0 0
    %270 = vperm.xlu0 %269, %v236
    %v271 = vpop.permute.xlu0 %270
    %274 = vset.pattern.permute.xlu0 0
    %275 = vperm.xlu0 %274, %v237
    %v276 = vpop.permute.xlu0 %275
    %vm278 = vcmask 523264
    %v280 = vsel %vm278, %v222, 0
    %v283 = vsel %vm278, %v223, 0
    %v286 = vsel %vm278, %v224, 0
    %v289 = vsel %vm278, %v225, 0
    %v292 = vsel %vm278, %v226, 0
    %v295 = vsel %vm278, %v227, 0
    %v298 = vsel %vm278, %v228, 0
    %v301 = vsel %vm278, %v229, 0
    %303 = vmatpush.msra.mxu0 0.0
    %304 = vmatpush.msra.mxu0 0.0
    %305 = vmatpush.msra.mxu0 0.0
    %306 = vmatpush.msra.mxu0 0.0
    %307 = vmatpush.msra.mxu0 0.0
    %308 = vmatpush.msra.mxu0 0.0
    %309 = vmatpush.msra.mxu0 0.0
    %310 = vmatpush.msra.mxu0 0.0
    %311 = vmatpush.msra.mxu0 %v221
    %312 = vmatpush.msra.mxu0 %v220
    %313 = vmatpush.msra.mxu0 %v219
    %314 = vmatpush.msra.mxu0 %v218
    %315 = vmatpush.msra.mxu0 %v217
    %316 = vmatpush.msra.mxu0 %v216
    %317 = vmatpush.msra.mxu0 %v215
    %318 = vmatpush.msra.mxu0 %v214
    %319 = vmatmul.f32.gmra.mxu0 %v280
    %v320 = vpop.f32.mrf.mxu0
    %v321 = vadd.f32 %v241, %v320
    %322 = vmatmul.f32.gmra.mxu0 %v283
    %v323 = vpop.f32.mrf.mxu0
    %v324 = vadd.f32 %v246, %v323
    %325 = vmatmul.f32.gmra.mxu0 %v286
    %v326 = vpop.f32.mrf.mxu0
    %v327 = vadd.f32 %v251, %v326
    %328 = vmatmul.f32.gmra.mxu0 %v289
    %v329 = vpop.f32.mrf.mxu0
    %v330 = vadd.f32 %v256, %v329
    %331 = vmatmul.f32.gmra.mxu0 %v292
    %v332 = vpop.f32.mrf.mxu0
    %v333 = vadd.f32 %v261, %v332
    %334 = vmatmul.f32.gmra.mxu0 %v295
    %v335 = vpop.f32.mrf.mxu0
    %v336 = vadd.f32 %v266, %v335
    %337 = vmatmul.f32.gmra.mxu0 %v298
    %v338 = vpop.f32.mrf.mxu0
    %v339 = vadd.f32 %v271, %v338
    %340 = vmatmul.f32.gmra.mxu0 %v301
    %v341 = vpop.f32.mrf.mxu0
    %v342 = vadd.f32 %v276, %v341
    %343 = vdwg.mxu0
    %v344 = vmax.f32 %v321, 0.0
    %v345 = vmax.f32 %v324, 0.0
    %v346 = vmax.f32 %v327, 0.0
    %v347 = vmax.f32 %v330, 0.0
    %v348 = vmax.f32 %v333, 0.0
    %v349 = vmax.f32 %v336, 0.0
    %v350 = vmax.f32 %v339, 0.0
    %v351 = vmax.f32 %v342, 0.0
    %v352 = vld [vmem:[%s5] sm:$0xff]
    %v353 = vld [vmem:[%s5 + $0x8] sm:$0xff]
    %v354 = vld [vmem:[%s5 + $0x10] sm:$0xff]
    %v355 = vld [vmem:[%s5 + $0x18] sm:$0xff]
    %v356 = vld [vmem:[%s5 + $0x20] sm:$0xff]
    %v357 = vld [vmem:[%s5 + $0x28] sm:$0xff]
    %v358 = vld [vmem:[%s5 + $0x30] sm:$0xff]
    %v359 = vld [vmem:[%s5 + $0x38] sm:$0xff]
    %361 = vset.pattern.permute.xlu0 0
    %362 = vperm.xlu0 %361, %v352
    %v363 = vpop.permute.xlu0 %362
    %366 = vset.pattern.permute.xlu0 0
    %367 = vperm.xlu0 %366, %v353
    %v368 = vpop.permute.xlu0 %367
    %371 = vset.pattern.permute.xlu0 0
    %372 = vperm.xlu0 %371, %v354
    %v373 = vpop.permute.xlu0 %372
    %376 = vset.pattern.permute.xlu0 0
    %377 = vperm.xlu0 %376, %v355
    %v378 = vpop.permute.xlu0 %377
    %381 = vset.pattern.permute.xlu0 0
    %382 = vperm.xlu0 %381, %v356
    %v383 = vpop.permute.xlu0 %382
    %386 = vset.pattern.permute.xlu0 0
    %387 = vperm.xlu0 %386, %v357
    %v388 = vpop.permute.xlu0 %387
    %391 = vset.pattern.permute.xlu0 0
    %392 = vperm.xlu0 %391, %v358
    %v393 = vpop.permute.xlu0 %392
    %396 = vset.pattern.permute.xlu0 0
    %397 = vperm.xlu0 %396, %v359
    %v398 = vpop.permute.xlu0 %397
    %v400 = vmul.f32 %v344, %v363
    %v401 = vmul.f32 %v345, %v368
    %v402 = vmul.f32 %v346, %v373
    %v403 = vmul.f32 %v347, %v378
    %v404 = vmul.f32 %v348, %v383
    %v405 = vmul.f32 %v349, %v388
    %v406 = vmul.f32 %v350, %v393
    %v407 = vmul.f32 %v351, %v398
    %v408 = vadd.f32 %v400, %v401
    %v409 = vadd.f32 %v408, %v402
    %v410 = vadd.f32 %v409, %v403
    %v411 = vadd.f32 %v410, %v404
    %v412 = vadd.f32 %v411, %v405
    %v413 = vadd.f32 %v412, %v406
    %v414 = vadd.f32 %v413, %v407
    %v415 = vrot.slane %v414, 4
    %v416 = vadd.f32 %v414, %v415
    %v417 = vrot.slane %v416, 2
    %v418 = vadd.f32 %v416, %v417
    %v419 = vrot.slane %v418, 1
    %v420 = vadd.f32 %v418, %v419
    %s421 = sld [smem:[#allocation2]]
    %v422 = vstv %s421
    %v423 = vadd.f32 %v420, %v422
    %v424 = vtanh.pop %v423
    %425 = vst [vmem:[#allocation3] sm:$0x1] %v424
    // Predicated region
    $region30: #{tpu_custom_call.1} parent=1 // pred_check
      _
    $region31: #{tpu_custom_call.1} parent=1 // pred_check_branch
      %427 = sbr.rel (0) target = $region33
    $region32: #{tpu_custom_call.1} parent=1 // pred_region
      %429 = vsyncadd [#allocation4], 0
      %s431 = sshll.u32 [#allocation3], 4
      %s432 = int_to_ptr.vmem [resolvable:$true] %s431
      %s433 = sshll.u32 %s7, 4
      %s434 = int_to_ptr.hbm [resolvable:$true] %s433
      %436 = dma.vmem_to_hbm [thread:$0]  %s432, 16, %s434, [#allocation4]
    $region33: #{tpu_custom_call.1} parent=1 // pred_fallthru
      _
    // Predicated region
    $region34: #{tpu_custom_call.1} parent=1 // pred_check
      _
    $region35: #{tpu_custom_call.1} parent=1 // pred_check_branch
      %438 = sbr.rel (0) target = $region37
    $region36: #{tpu_custom_call.1} parent=1 // pred_region
      %440 = dma.done [#allocation4], 16
    $region37: #{tpu_custom_call.1} parent=1 // pred_fallthru
      _
    %441 = vsyncpa [#allocation4], 1

</llo_original>
